<compile_context>
chip_gen: v7x
topology: tpu7x:2x2x1
jax: 0.10.0
libtpu: 0.0.40
codegen_flags: <defaults>
</compile_context>

<pallas_src>
import math

import jax
import jax.numpy as jnp
from jax.experimental import pallas as pl
from jax.experimental.pallas import tpu as pltpu


def _round_up(x, m):
    return ((x + m - 1) // m) * m


def _fused_conv_matmul_kernel(w_ref, x_ref, o_ref):
    # w_ref : (Cp, Dp)   im2col conv weight with the bias column folded in
    # x_ref : (Dp, tn)   im2col'd activations (ones row for bias), lane tile
    # o_ref : (Cp, tn)   lane-dense output tile
    o_ref[...] = jnp.dot(
        w_ref[...], x_ref[...], preferred_element_type=jnp.float32
    ).astype(o_ref.dtype)


def temporal_fusion_forward(x, weight, bias, *, padding=1):
    """Conv1d forward, PyTorch nn.Conv1d semantics (stride=1, dilation=1, groups=1).

    x      : (B, Cin, L)
    weight : (Cout, Cin, K)   (PyTorch layout)
    bias   : (Cout,)
    returns: (B, Cout, L_out) with L_out = L + 2*padding - K + 1
    """
    # TODO(synk): only stride=1 / dilation=1 / groups=1 (the module's config) is supported.
    B, Cin, L = x.shape
    Cout, Cin_w, K = weight.shape
    assert Cin_w == Cin, "grouped conv not supported"
    L_out = L + 2 * padding - K + 1

    dtype = x.dtype
    Cp = _round_up(max(Cin, Cout), 8)        # channel pad (e.g. 14 -> 16)
    Lo_pad = _round_up(L_out, 128)           # lane-dense per-batch output length
    Lp_pad = Lo_pad + K - 1                  # input length fed to im2col
    depth = K * Cp + 1                       # contraction depth (+1 = bias row)
    Dp = _round_up(depth, 8)

    # ---------- wrapper-side layout plumbing ----------
    # One fused pad: channel pad + conv "same" pad + lane pad.
    x_pad = jnp.pad(
        x, ((0, 0), (0, Cp - Cin), (padding, Lp_pad - L - padding)))

    # im2col: cols[b, k*Cp + c, t] = x_pad[b, c, t + k]   (K is tiny & static).
    cols = jnp.stack([x_pad[:, :, k:k + Lo_pad] for k in range(K)], axis=1)
    cols = cols.reshape(B, K * Cp, Lo_pad)

    # Fold bias into the matmul: append a ones row + zero depth-padding rows.
    ones = jnp.ones((B, 1, Lo_pad), dtype)
    zpad = jnp.zeros((B, Dp - depth, Lo_pad), dtype)
    x_col = jnp.concatenate([cols, ones, zpad], axis=1)          # (B, Dp, Lo_pad)

    # Pack batch under the lane axis: one wide matmul per grid step.
    x_col = jnp.transpose(x_col, (1, 0, 2)).reshape(Dp, B * Lo_pad)

    # Fused weight: row o = [w[o,:,0], ..., w[o,:,K-1], bias[o], 0...].
    w_p = jnp.pad(weight, ((0, Cp - Cout), (0, Cp - Cin), (0, 0)))
    w_fused = jnp.transpose(w_p, (0, 2, 1)).reshape(Cp, K * Cp)
    b_col = jnp.pad(bias, (0, Cp - Cout)).reshape(Cp, 1)
    w_full = jnp.concatenate(
        [w_fused, b_col, jnp.zeros((Cp, Dp - depth), w_fused.dtype)],
        axis=1).astype(dtype)                                    # (Cp, Dp)

    # ---------- lane tiling (collapses to ONE grid step at small shapes) ----------
    N_total = B * Lo_pad                      # multiple of 128
    tn = min(N_total, 2048)                   # lane-tile; multiple of 128 either way
    n_steps = pl.cdiv(N_total, tn)
    N_pad = n_steps * tn
    if N_pad != N_total:
        x_col = jnp.pad(x_col, ((0, 0), (0, N_pad - N_total)))

    itemsize = jnp.dtype(dtype).itemsize
    cost = pl.CostEstimate(
        flops=2 * Cp * Dp * N_pad,
        transcendentals=0,
        bytes_accessed=(Dp * N_pad + Cp * Dp + Cp * N_pad) * itemsize,
    )

    out = pl.pallas_call(
        _fused_conv_matmul_kernel,
        out_shape=jax.ShapeDtypeStruct((Cp, N_pad), dtype),
        grid_spec=pltpu.PrefetchScalarGridSpec(
            num_scalar_prefetch=0,
            grid=(n_steps,),
            in_specs=[
                pl.BlockSpec((Cp, Dp), lambda i: (0, 0)),   # weight, resident
                pl.BlockSpec((Dp, tn), lambda i: (0, i)),   # x_col lane tile
            ],
            out_specs=pl.BlockSpec((Cp, tn), lambda i: (0, i)),
        ),
        compiler_params=pltpu.CompilerParams(
            dimension_semantics=("parallel",),
        ),
        cost_estimate=cost,
    )(w_full, x_col)

    # Unpack: (Cp, B*Lo_pad) -> (B, Cout, L_out); strip all padding.
    out = out[:, :N_total].reshape(Cp, B, Lo_pad)
    out = jnp.transpose(out, (1, 0, 2))[:, :Cout, :L_out]
    return out


if __name__ == "__main__":
    # opts.size = 256  -> n_styles = int(log2(256)*2 - 2) = 14
    # opts.temporal_fusion_kernel_size = 3, padding = 1
    size = 256
    n_styles = int(math.log(size, 2) * 2 - 2)   # 14
    ksize = 3
    padding = 1
    B, L = 2, 32

    key = jax.random.PRNGKey(0)
    kx, kw, kb = jax.random.split(key, 3)

    x = jax.random.normal(kx, (B, n_styles, L), dtype=jnp.float32)

    # Deterministic param init (matching PyTorch Conv1d default uniform bound).
    fan_in = n_styles * ksize
    bound = 1.0 / math.sqrt(fan_in)
    weight = jax.random.uniform(
        kw, (n_styles, n_styles, ksize), minval=-bound, maxval=bound,
        dtype=jnp.float32)
    bias = jax.random.uniform(
        kb, (n_styles,), minval=-bound, maxval=bound, dtype=jnp.float32)

    out = temporal_fusion_forward(x, weight, bias, padding=padding)
    out = jax.block_until_ready(out)

    # Pure-JAX reference (same semantics as nn.Conv1d, stride=1).
    x_ref_pad = jnp.pad(x, ((0, 0), (0, 0), (padding, padding)))
    L_out = L + 2 * padding - ksize + 1
    ref = jnp.zeros((B, n_styles, L_out), jnp.float32)
    for k in range(ksize):
        ref = ref + jnp.einsum(
            "oc,bcl->bol", weight[:, :, k], x_ref_pad[:, :, k:k + L_out])
    ref = ref + bias[None, :, None]

    assert out.shape == (B, n_styles, L_out)
    assert jnp.allclose(out, ref, atol=1e-4, rtol=1e-4)
    print("KERNEL_OK")
</pallas_src>

<mosaic_0001>
module attributes {stable_mosaic.version = 11 : i64} {
  func.func @_fused_conv_matmul_kernel(%arg0: i32, %arg1: memref<16x56xf32, #tpu.memory_space<vmem>>, %arg2: memref<56x256xf32, #tpu.memory_space<vmem>>, %arg3: memref<16x256xf32, #tpu.memory_space<vmem>>) attributes {dimension_semantics = [#tpu.dimension_semantics<parallel>], iteration_bounds = array<i64: 1>, scalar_prefetch = 0 : i64, scratch_operands = 0 : i64, tpu.core_type = #tpu.core_type<tc>, window_params = [{pipeline_mode = #tpu.pipeline_mode<synchronous>, transform_indices = @transform_0, window_bounds = array<i64: 16, 56>}, {transform_indices = @transform_1, window_bounds = array<i64: 56, 256>}, {transform_indices = @transform_2, window_bounds = array<i64: 16, 256>}]} {
    %c0 = arith.constant 0 : index
    %c0_0 = arith.constant 0 : index
    %0 = vector.load %arg1[%c0, %c0_0] : memref<16x56xf32, #tpu.memory_space<vmem>>, vector<16x56xf32>
    %c0_1 = arith.constant 0 : index
    %c0_2 = arith.constant 0 : index
    %1 = vector.load %arg2[%c0_1, %c0_2] : memref<56x256xf32, #tpu.memory_space<vmem>>, vector<56x256xf32>
    %cst = arith.constant dense<0.000000e+00> : vector<16x256xf32>
    %2 = tpu.matmul %0, %1, %cst {dimension_numbers = #tpu.dot_dimension_numbers<[1], [0], [0], [1], [0, 0, 1, 1], [], []>} : vector<16x56xf32>, vector<56x256xf32>, vector<16x256xf32> -> vector<16x256xf32>
    %c0_3 = arith.constant 0 : index
    %c0_4 = arith.constant 0 : index
    %3 = vector.load %arg3[%c0_3, %c0_4] : memref<16x256xf32, #tpu.memory_space<vmem>>, vector<16x256xf32>
    tpu.vector_store %arg3[%c0_3, %c0_4], %2 {strides = array<i32>} : memref<16x256xf32, #tpu.memory_space<vmem>>, vector<16x256xf32>,
    return
  }
  func.func @transform_0(%arg0: i32) -> (i32, i32) {
    %c0_i32 = arith.constant 0 : i32
    %c0_i32_0 = arith.constant 0 : i32
    %c0_i32_1 = arith.constant 0 : i32
    return %c0_i32, %c0_i32_0 : i32, i32
  }
  func.func @transform_1(%arg0: i32) -> (i32, i32) {
    %c0_i32 = arith.constant 0 : i32
    %c0_i32_0 = arith.constant 0 : i32
    return %c0_i32, %arg0 : i32, i32
  }
  func.func @transform_2(%arg0: i32) -> (i32, i32) {
    %c0_i32 = arith.constant 0 : i32
    %c0_i32_0 = arith.constant 0 : i32
    return %c0_i32, %arg0 : i32, i32
  }
}

</mosaic_0001>

<llo_original>
// kernel: tpu_custom_call.1
$region0: #{tpu_custom_call.1}
  #allocation0 [shape = 'u32[]', space=smem, size = 0x4, offset = 0x4, fixed_abs, tag = 'smem constant byte address 0x4 - core index']
  #allocation1 [shape = 'u32[144,128]{1,0:T(1,128)}', space=vmem, size = 0x12000, scoped, tag = 'internal scratch']
  %s0 = inlined_call_operand.hbm [shape: f32[16,56], index: 0, kind: input, shape index: {}]
  %s1 = inlined_call_operand.hbm [shape: f32[56,256], index: 1, kind: input, shape index: {}]
  %s2 = inlined_call_operand.hbm [shape: f32[16,256], index: 2, kind: output, shape index: {}]
  %s3 = sld [smem:[#allocation0]]
  $region26: #{tpu_custom_call.1} parent=0
    _
  %s5 = ssub.s32 1, %s3
  %s6 = scalar_select 0, %s5, %s3
  $region1: #{tpu_custom_call.1} parent=0
    #allocation2 [shape = 'u8[8192]{0}', space=vmem, size = 0x2000, scoped, tag = 'input window, operand 0, single buffered']
    #allocation3 [shape = 's32[1]{0}', space=sflag, size = 0x4, scoped, tag = 'scoped memory for tpu_custom_call.1']
    #allocation4 [shape = 's32[1]{0}', space=sflag, size = 0x4, scoped, tag = 'scoped memory for tpu_custom_call.1']
    #allocation5 [shape = 'u8[57344]{0}', space=vmem, size = 0xe000, scoped, tag = 'input window, operand 1, single buffered']
    #allocation6 [shape = 's32[1]{0}', space=sflag, size = 0x4, scoped, tag = 'scoped memory for tpu_custom_call.1']
    #allocation7 [shape = 'u8[16384]{0}', space=vmem, size = 0x4000, scoped, tag = 'output window, operand 0, single buffered']
    %7 = vsyncpa [#allocation3], 0
    %8 = vsyncpa [#allocation6], 0
    %9 = vsyncpa [#allocation4], 0
    // Predicated region
    $region2: #{tpu_custom_call.1} parent=1 // pred_check
      _
    $region3: #{tpu_custom_call.1} parent=1 // pred_check_branch
      %11 = sbr.rel (0) target = $region5
    $region4: #{tpu_custom_call.1} parent=1 // pred_region
      %s13 = ssub.s32 256, 256
      %14 = vsyncadd [#allocation3], %s13
      %s15 = sshll.u32 [#allocation2], 4
      %s16 = int_to_ptr.vmem [resolvable:$true] %s15
      %21 = dma.hbm_to_vmem [thread:$0]  %s0, 256, %s16, [#allocation3], 128, 128, 8
    $region5: #{tpu_custom_call.1} parent=1 // pred_fallthru
      _
    // Predicated region
    $region6: #{tpu_custom_call.1} parent=1 // pred_check
      _
    $region7: #{tpu_custom_call.1} parent=1 // pred_check_branch
      %23 = sbr.rel (0) target = $region9
    $region8: #{tpu_custom_call.1} parent=1 // pred_region
      %s25 = ssub.s32 1792, 1792
      %26 = vsyncadd [#allocation6], %s25
      %s27 = sshll.u32 [#allocation5], 4
      %s28 = int_to_ptr.vmem [resolvable:$true] %s27
      %33 = dma.hbm_to_vmem [thread:$0]  %s1, 1792, %s28, [#allocation6], 256, 256, 16
    $region9: #{tpu_custom_call.1} parent=1 // pred_fallthru
      _
    // Predicated region
    $region10: #{tpu_custom_call.1} parent=1 // pred_check
      _
    $region11: #{tpu_custom_call.1} parent=1 // pred_check_branch
      %35 = sbr.rel (0) target = $region13
    $region12: #{tpu_custom_call.1} parent=1 // pred_region
      %36 = dma.done [#allocation3], 256
    $region13: #{tpu_custom_call.1} parent=1 // pred_fallthru
      _
    // Predicated region
    $region14: #{tpu_custom_call.1} parent=1 // pred_check
      _
    $region15: #{tpu_custom_call.1} parent=1 // pred_check_branch
      %38 = sbr.rel (0) target = $region17
    $region16: #{tpu_custom_call.1} parent=1 // pred_region
      %39 = dma.done [#allocation6], 1792
    $region17: #{tpu_custom_call.1} parent=1 // pred_fallthru
      _
    %v40 = vld [vmem:[#allocation2] sm:$0xff]
    %v41 = vld [vmem:[#allocation2 + $0x8] sm:$0xff]
    %v42 = vld [vmem:[#allocation5] sm:$0xff]
    %v43 = vld [vmem:[#allocation5 + $0x8] sm:$0xff]
    %v44 = vld [vmem:[#allocation5 + $0x10] sm:$0xff]
    %v45 = vld [vmem:[#allocation5 + $0x18] sm:$0xff]
    %v46 = vld [vmem:[#allocation5 + $0x20] sm:$0xff]
    %v47 = vld [vmem:[#allocation5 + $0x28] sm:$0xff]
    %v48 = vld [vmem:[#allocation5 + $0x30] sm:$0xff]
    %v49 = vld [vmem:[#allocation5 + $0x38] sm:$0xff]
    %v50 = vld [vmem:[#allocation5 + $0x40] sm:$0xff]
    %v51 = vld [vmem:[#allocation5 + $0x48] sm:$0xff]
    %v52 = vld [vmem:[#allocation5 + $0x50] sm:$0xff]
    %v53 = vld [vmem:[#allocation5 + $0x58] sm:$0xff]
    %v54 = vld [vmem:[#allocation5 + $0x60] sm:$0xff]
    %v55 = vld [vmem:[#allocation5 + $0x68] sm:$0xff]
    %vm56 = vcmask 457728
    %v58 = vsel %vm56, %v40, 0
    %v61 = vsel %vm56, %v41, 0
    %63 = vmatprep.subr.mxu0 %v43
    %64 = vmatpush1.msra.mxu0 %v42
    %65 = vmatprep.subr.mxu0 %v45
    %66 = vmatpush1.msra.mxu0 %v44
    %67 = vmatprep.subr.mxu0 %v47
    %68 = vmatpush1.msra.mxu0 %v46
    %69 = vmatprep.subr.mxu0 %v49
    %70 = vmatpush1.msra.mxu0 %v48
    %71 = vmatprep.subr.mxu0 %v51
    %72 = vmatpush1.msra.mxu0 %v50
    %73 = vmatprep.subr.mxu0 %v53
    %74 = vmatpush1.msra.mxu0 %v52
    %75 = vmatprep.subr.mxu0 %v55
    %76 = vmatpush1.msra.mxu0 %v54
    %77 = vmatprep.subr.mxu0 0.0
    %78 = vmatpush1.msra.mxu0 0.0
    %79 = vmatprep.subr.mxu0 0.0
    %80 = vmatpush1.msra.mxu0 0.0
    %81 = vmatprep.subr.mxu0 0.0
    %82 = vmatpush1.msra.mxu0 0.0
    %83 = vmatprep.subr.mxu0 0.0
    %84 = vmatpush1.msra.mxu0 0.0
    %85 = vmatprep.subr.mxu0 0.0
    %86 = vmatpush1.msra.mxu0 0.0
    %87 = vmatprep.subr.mxu0 0.0
    %88 = vmatpush1.msra.mxu0 0.0
    %89 = vmatprep.subr.mxu0 0.0
    %90 = vmatpush1.msra.mxu0 0.0
    %91 = vmatprep.subr.mxu0 0.0
    %92 = vmatpush1.msra.mxu0 0.0
    %93 = vmatprep.subr.mxu0 0.0
    %94 = vmatpush1.msra.mxu0 0.0
    %95 = vmatprep.subr.mxu0 0.0
    %96 = vmatpush1.msra.mxu0 0.0
    %97 = vmatprep.subr.mxu0 0.0
    %98 = vmatpush1.msra.mxu0 0.0
    %99 = vmatprep.subr.mxu0 0.0
    %100 = vmatpush1.msra.mxu0 0.0
    %101 = vmatprep.subr.mxu0 0.0
    %102 = vmatpush1.msra.mxu0 0.0
    %103 = vmatprep.subr.mxu0 0.0
    %104 = vmatpush1.msra.mxu0 0.0
    %105 = vmatprep.subr.mxu0 0.0
    %106 = vmatpush1.msra.mxu0 0.0
    %107 = vmatprep.subr.mxu0 0.0
    %108 = vmatpush1.msra.mxu0 0.0
    %109 = vmatprep.subr.mxu0 0.0
    %110 = vmatpush1.msra.mxu0 0.0
    %111 = vmatprep.subr.mxu0 0.0
    %112 = vmatpush1.msra.mxu0 0.0
    %113 = vmatprep.subr.mxu0 0.0
    %114 = vmatpush1.msra.mxu0 0.0
    %115 = vmatprep.subr.mxu0 0.0
    %116 = vmatpush1.msra.mxu0 0.0
    %117 = vmatprep.subr.mxu0 0.0
    %118 = vmatpush1.msra.mxu0 0.0
    %119 = vmatprep.subr.mxu0 0.0
    %120 = vmatpush1.msra.mxu0 0.0
    %121 = vmatprep.subr.mxu0 0.0
    %122 = vmatpush1.msra.mxu0 0.0
    %123 = vmatprep.subr.mxu0 0.0
    %124 = vmatpush1.msra.mxu0 0.0
    %125 = vmatprep.subr.mxu0 0.0
    %126 = vmatpush1.msra.mxu0 0.0
    %127 = vmatprep.mubr.f32.mxu0 0.0
    %128 = vmatmul.mubr.f32.gmra.mrb[0].mxu0 %v58
    %v129 = vpop.f32.mrb[0].mxu0
    %v130 = vadd.f32 0.0, %v129
    %v131 = vpop.f32.mrb[0].mxu0
    %v132 = vadd.f32 0.0, %v131
    %133 = vmatprep.mubr.f32.mxu0 0.0
    %134 = vmatmul.mubr.f32.gmra.mrb[0].mxu0 %v61
    %v135 = vpop.f32.mrb[0].mxu0
    %v136 = vadd.f32 0.0, %v135
    %v137 = vpop.f32.mrb[0].mxu0
    %v138 = vadd.f32 0.0, %v137
    %139 = vdwg.mxu0
    %140 = vst [vmem:[#allocation7] sm:$0xff] %v130
    %141 = vst [vmem:[#allocation7 + $0x8] sm:$0xff] %v132
    %142 = vst [vmem:[#allocation7 + $0x10] sm:$0xff] %v136
    %143 = vst [vmem:[#allocation7 + $0x18] sm:$0xff] %v138
    // Predicated region
    $region18: #{tpu_custom_call.1} parent=1 // pred_check
      _
    $region19: #{tpu_custom_call.1} parent=1 // pred_check_branch
      %145 = sbr.rel (0) target = $region21
    $region20: #{tpu_custom_call.1} parent=1 // pred_region
      %s147 = ssub.s32 512, 512
      %148 = vsyncadd [#allocation4], %s147
      %s149 = sshll.u32 [#allocation7], 4
      %s150 = int_to_ptr.vmem [resolvable:$true] %s149
      %155 = dma.vmem_to_hbm [thread:$0]  %s150, 512, %s2, [#allocation4], 256, 256, 16
    $region21: #{tpu_custom_call.1} parent=1 // pred_fallthru
      _
    // Predicated region
    $region22: #{tpu_custom_call.1} parent=1 // pred_check
      _
    $region23: #{tpu_custom_call.1} parent=1 // pred_check_branch
      %157 = sbr.rel (0) target = $region25
    $region24: #{tpu_custom_call.1} parent=1 // pred_region
      %158 = dma.done [#allocation4], 512
    $region25: #{tpu_custom_call.1} parent=1 // pred_fallthru
      _
    %159 = vsyncpa [#allocation3], 1
    %160 = vsyncpa [#allocation6], 1
    %161 = vsyncpa [#allocation4], 1

</llo_original>
